<compile_context>
chip_gen: v7x
topology: tpu7x:2x2x1
jax: 0.10.0
libtpu: 0.0.40
codegen_flags: <defaults>
</compile_context>

<pallas_src>
import jax
import jax.numpy as jnp
from jax.experimental import pallas as pl
from jax.experimental.pallas import tpu as pltpu


_SINGLE_TILE_ROWS = 128   # batches this small take the no-grid fast path
_MAX_TM = 1024            # max rows per batch tile when gridded


# ----------------------------- Pallas kernel ------------------------------ #
def _fc_relu_kernel(x_ref, w_ref, b_ref, o_ref):
    # x: (tm, d_in) f32  -> cast to bf16 in-kernel (no extra HBM pass),
    # w: (d_in, d_out) bf16 (prepared once at parameter init),
    # b: (1, d_out) f32,
    # o: (tm, d_out) f32.
    # Single MXU pass with f32 accumulation; bias broadcast + ReLU on the VPU
    # in f32 (safe on v5e which has no bf16 VPU).
    x_bf = x_ref[...].astype(jnp.bfloat16)
    y = jnp.dot(x_bf, w_ref[...], preferred_element_type=jnp.float32)
    y = y + b_ref[...]
    o_ref[...] = jnp.maximum(y, 0.0).astype(o_ref.dtype)


def _round_up(x, m):
    return (x + m - 1) // m * m


def prepare_observe_embedding_params(w, b):
    """One-time parameter prep (hoisted out of the per-call wrapper):
    weights to bf16 for the MXU, bias to (1, d_out) f32 for the epilogue."""
    d_in, d_out = w.shape
    w_bf = w.astype(jnp.bfloat16)
    b_f32 = jnp.asarray(b, dtype=jnp.float32).reshape(1, d_out)
    del d_in
    return w_bf, b_f32


def observe_embedding_fc(x, w_bf16, b_f32):
    """relu(x @ w + b) as a Pallas TPU kernel.

    x: (batch, d_in) f32, w_bf16: (d_in, d_out) bf16, b_f32: (1, d_out) f32.
    Returns (batch, d_out) f32.
    """
    batch, d_in = x.shape
    d_in_w, d_out = w_bf16.shape
    assert d_in == d_in_w and b_f32.shape == (1, d_out)

    if batch <= _SINGLE_TILE_ROWS:
        # Tiny / latency-dominated call: one tile, no grid, no pipeline
        # prologue/epilogue.
        m_pad = _round_up(max(batch, 1), 8)
        num_tiles, tm = 1, m_pad
    else:
        # Keep >= 2 tiles so the "parallel" batch axis can shard across the
        # two TensorCores on v7x; cap tiles at _MAX_TM rows.
        num_tiles = max(2, pl.cdiv(batch, _MAX_TM))
        tm = _round_up(pl.cdiv(batch, num_tiles), 8)
        m_pad = tm * num_tiles

    # Only the batch (row) dim is ever padded; d_in / d_out stay unpadded
    # (block dims equal to the full array dims satisfy the (8,128) rule).
    x_p = x if m_pad == batch else jnp.pad(x, ((0, m_pad - batch), (0, 0)))

    out_shape = jax.ShapeDtypeStruct((m_pad, d_out), jnp.float32)

    # Scoped-VMEM cap with headroom (x tile f32 + w bf16 + b f32 + out tile
    # f32, x4 for double buffering + slack).  Explicit because v7x has only
    # 64 MiB physical / 32 MiB scoped-default VMEM.
    tile_bytes = (tm * d_in * 4 + d_in * d_out * 2 + d_out * 4 + tm * d_out * 4)
    vmem_limit = int(min(48 << 20, max(8 << 20, 4 * tile_bytes)))

    if num_tiles == 1:
        out = pl.pallas_call(
            _fc_relu_kernel,
            out_shape=out_shape,
            in_specs=[
                pl.BlockSpec(memory_space=pltpu.MemorySpace.VMEM),  # x
                pl.BlockSpec(memory_space=pltpu.MemorySpace.VMEM),  # w
                pl.BlockSpec(memory_space=pltpu.MemorySpace.VMEM),  # b
            ],
            out_specs=pl.BlockSpec(memory_space=pltpu.MemorySpace.VMEM),
            compiler_params=pltpu.CompilerParams(
                vmem_limit_bytes=vmem_limit),
        )(x_p, w_bf16, b_f32)
    else:
        out = pl.pallas_call(
            _fc_relu_kernel,
            out_shape=out_shape,
            grid=(num_tiles,),
            in_specs=[
                pl.BlockSpec((tm, d_in), lambda i: (i, 0)),      # x batch tile
                pl.BlockSpec((d_in, d_out), lambda i: (0, 0)),   # w (resident)
                pl.BlockSpec((1, d_out), lambda i: (0, 0)),      # b (resident)
            ],
            out_specs=pl.BlockSpec((tm, d_out), lambda i: (i, 0)),
            compiler_params=pltpu.CompilerParams(
                dimension_semantics=("parallel",),               # v7x: 2 TCs
                vmem_limit_bytes=vmem_limit),
        )(x_p, w_bf16, b_f32)

    # Padded batch rows evaluate relu(b) (NOT zero); slice them off before
    # returning.  No column slice is needed any more (d_out is unpadded).
    if m_pad != batch:
        out = out[:batch]
    return out


# --------------------------- Model (JAX mirror) ---------------------------- #
class Model:
    """JAX mirror of pyprob.Model.  forward() is abstract, as in the
    PyTorch reference."""

    def __init__(self, name="Unnamed pyprob model"):
        self.name = name
        self._inference_network = None
        self._observe_embedding_params = None

    def forward(self, *args, **kwargs):
        # Matches the reference semantics exactly: abstract base, no compute.
        raise NotImplementedError()

    # TODO(synk): _prior_trace_generator / prior_distribution /
    # posterior_distribution / learn_inference_network / Empirical / Adam
    # are host-side trace bookkeeping and training loops with no
    # Pallas-kernel equivalent.

    def set_observe_embedding_params(self, w, b):
        """One-time FULLY_CONNECTED observe-embedding parameter prep
        (bf16 weights, f32 bias) so per-call work is kernel-only."""
        self._observe_embedding_params = prepare_observe_embedding_params(w, b)

    def observe_embedding(self, packed_observations):
        """FULLY_CONNECTED observe embedding (the one concrete tensor op the
        module implies), executed on the Pallas kernel above."""
        assert self._observe_embedding_params is not None
        w_bf, b_f32 = self._observe_embedding_params
        return observe_embedding_fc(packed_observations, w_bf, b_f32)


# --------------------------------- main ------------------------------------ #
if __name__ == "__main__":
    key = jax.random.PRNGKey(0)
    k_x, k_w, k_b, k_s = jax.random.split(key, 4)

    # A batch of packed observations -> observe embedding.
    # batch=256 exercises the tiled/parallel path (2 batch tiles of 128);
    # d_in=64 packed observation, d_out=32 observe embedding dim.
    batch, d_in, d_out = 256, 64, 32

    x = jax.random.normal(k_x, (batch, d_in), dtype=jnp.float32)
    # Deterministic parameter init in-script (no checkpoint loading).
    w = (jax.random.normal(k_w, (d_in, d_out), dtype=jnp.float32)
         * (1.0 / jnp.sqrt(d_in)))
    b = jax.random.normal(k_b, (1, d_out), dtype=jnp.float32) * 0.01

    model = Model(name="pallas pyprob model")
    model.set_observe_embedding_params(w, b)

    # Abstract forward mirrors the reference (raises NotImplementedError).
    try:
        model.forward()
        raise AssertionError("forward() should be abstract")
    except NotImplementedError:
        pass

    def ref_fn(xs):
        # Reference with the same numerics as the kernel (bf16 matmul
        # operands, f32 accumulation + epilogue).
        xb = xs.astype(jnp.bfloat16).astype(jnp.float32)
        wb = w.astype(jnp.bfloat16).astype(jnp.float32)
        return jnp.maximum(xb @ wb + b, 0.0)

    # --- gridded / parallel path (batch=256 -> 2 tiles of 128) ---
    out = model.observe_embedding(x)
    out = jax.block_until_ready(out)
    assert out.shape == (batch, d_out)
    assert out.dtype == jnp.float32
    assert jnp.allclose(out, ref_fn(x), atol=2e-3, rtol=2e-3)
    # Sanity vs. full-f32 math (bf16 rounding only).
    ref_f32 = jnp.maximum(x @ w + b, 0.0)
    assert jnp.max(jnp.abs(out - ref_f32)) < 5e-2

    # --- single-tile (no-grid) fast path ---
    x_small = jax.random.normal(k_s, (16, d_in), dtype=jnp.float32)
    out_small = jax.block_until_ready(model.observe_embedding(x_small))
    assert out_small.shape == (16, d_out)
    assert jnp.allclose(out_small, ref_fn(x_small), atol=2e-3, rtol=2e-3)

    print("KERNEL_OK")
</pallas_src>

<mosaic_0001>
module attributes {stable_mosaic.version = 11 : i64} {
  func.func @_fc_relu_kernel(%arg0: i32, %arg1: memref<128x64xf32, #tpu.memory_space<vmem>>, %arg2: memref<64x32xbf16, #tpu.memory_space<vmem>>, %arg3: memref<1x32xf32, #tpu.memory_space<vmem>>, %arg4: memref<128x32xf32, #tpu.memory_space<vmem>>) attributes {dimension_semantics = [#tpu.dimension_semantics<parallel>], iteration_bounds = array<i64: 2>, scalar_prefetch = 0 : i64, scratch_operands = 0 : i64, tpu.core_type = #tpu.core_type<tc>, window_params = [{transform_indices = @transform_0, window_bounds = array<i64: 128, 64>}, {pipeline_mode = #tpu.pipeline_mode<synchronous>, transform_indices = @transform_1, window_bounds = array<i64: 64, 32>}, {pipeline_mode = #tpu.pipeline_mode<synchronous>, transform_indices = @transform_2, window_bounds = array<i64: 1, 32>}, {transform_indices = @transform_3, window_bounds = array<i64: 128, 32>}]} {
    %c0 = arith.constant 0 : index
    %c0_0 = arith.constant 0 : index
    %0 = vector.load %arg1[%c0, %c0_0] : memref<128x64xf32, #tpu.memory_space<vmem>>, vector<128x64xf32>
    %1 = arith.truncf %0 : vector<128x64xf32> to vector<128x64xbf16>
    %c0_1 = arith.constant 0 : index
    %c0_2 = arith.constant 0 : index
    %2 = vector.load %arg2[%c0_1, %c0_2] : memref<64x32xbf16, #tpu.memory_space<vmem>>, vector<64x32xbf16>
    %cst = arith.constant dense<0.000000e+00> : vector<128x32xf32>
    %3 = tpu.matmul %1, %2, %cst {dimension_numbers = #tpu.dot_dimension_numbers<[1], [0], [0], [1], [0, 0, 1, 1], [], []>} : vector<128x64xbf16>, vector<64x32xbf16>, vector<128x32xf32> -> vector<128x32xf32>
    %c0_3 = arith.constant 0 : index
    %c0_4 = arith.constant 0 : index
    %4 = vector.load %arg3[%c0_3, %c0_4] : memref<1x32xf32, #tpu.memory_space<vmem>>, vector<1x32xf32>
    %5 = vector.broadcast %4 : vector<1x32xf32> to vector<128x32xf32>
    %6 = arith.addf %3, %5 : vector<128x32xf32>
    %cst_5 = arith.constant 0.000000e+00 : f32
    %7 = vector.broadcast %cst_5 : f32 to vector<128x32xf32>
    %8 = arith.maximumf %6, %7 : vector<128x32xf32>
    %c0_6 = arith.constant 0 : index
    %c0_7 = arith.constant 0 : index
    %9 = vector.load %arg4[%c0_6, %c0_7] : memref<128x32xf32, #tpu.memory_space<vmem>>, vector<128x32xf32>
    tpu.vector_store %arg4[%c0_6, %c0_7], %8 {strides = array<i32>} : memref<128x32xf32, #tpu.memory_space<vmem>>, vector<128x32xf32>,
    return
  }
  func.func @transform_0(%arg0: i32) -> (i32, i32) {
    %c0_i32 = arith.constant 0 : i32
    %c0_i32_0 = arith.constant 0 : i32
    return %arg0, %c0_i32 : i32, i32
  }
  func.func @transform_1(%arg0: i32) -> (i32, i32) {
    %c0_i32 = arith.constant 0 : i32
    %c0_i32_0 = arith.constant 0 : i32
    %c0_i32_1 = arith.constant 0 : i32
    return %c0_i32, %c0_i32_0 : i32, i32
  }
  func.func @transform_2(%arg0: i32) -> (i32, i32) {
    %c0_i32 = arith.constant 0 : i32
    %c0_i32_0 = arith.constant 0 : i32
    %c0_i32_1 = arith.constant 0 : i32
    return %c0_i32, %c0_i32_0 : i32, i32
  }
  func.func @transform_3(%arg0: i32) -> (i32, i32) {
    %c0_i32 = arith.constant 0 : i32
    %c0_i32_0 = arith.constant 0 : i32
    return %arg0, %c0_i32 : i32, i32
  }
}

</mosaic_0001>

<llo_original>
// kernel: tpu_custom_call.1
$region0: #{tpu_custom_call.1}
  #allocation0 [shape = 'u32[]', space=smem, size = 0x4, offset = 0x4, fixed_abs, tag = 'smem constant byte address 0x4 - core index']
  #allocation1 [shape = 'u32[144,128]{1,0:T(1,128)}', space=vmem, size = 0x12000, scoped, tag = 'internal scratch']
  %s0 = inlined_call_operand.vmem [shape: f32[256,64], index: 0, kind: input, shape index: {}]
  %s1 = inlined_call_operand.vmem [shape: bf16[64,32], index: 1, kind: input, shape index: {}]
  %s2 = inlined_call_operand.vmem [shape: f32[1,32], index: 2, kind: input, shape index: {}]
  %s3 = inlined_call_operand.vmem [shape: f32[256,32], index: 3, kind: output, shape index: {}]
  %s4 = sld [smem:[#allocation0]]
  $region45: #{tpu_custom_call.1} parent=0
    _
  %s6 = ssub.s32 1, %s4
  %s7 = scalar_select 0, %s6, %s4
  loop: start=0, step=1, limit=4
  $region2: #{tpu_custom_call.1} parent=0 // loop_pre_header
    _
  $region3: #{tpu_custom_call.1} parent=0 // loop_header
    %s9 = sphi 0, %s13
    %p10 = scmp.ge.s32.totalorder %s9, 4
    %s19 = sphi 0, %s21
    %s22 = sphi 0, %s19
    %s23 = sphi 0, %s22
    %s39 = sphi 0, %s23
    %s43 = sphi 0, %s43
    %s45 = sphi 0, %s43
    %s46 = sphi 0, %s45
    %s60 = sphi 0, %s46
    %s64 = sphi 0, %s64
    %s66 = sphi 0, %s64
    %s67 = sphi 0, %s66
    %s81 = sphi 0, %s67
    %s87 = sphi 0, %s89
    %s90 = sphi 0, %s87
    %s91 = sphi 0, %s90
    %s107 = sphi 0, %s91
  $region4: #{tpu_custom_call.1} parent=0 // loop_header_branch
    %12 = sbr.rel (%p10) target = $region8
  $region5: #{tpu_custom_call.1} parent=0 // loop_body
    %s14 = ssub.s32 %s9, 1
    %s15 = ssub.s32 %s9, 2
    %s16 = sadd.s32 %s9, 1
    %s17 = ssub.s32 %s9, %s16
    %p18 = scmp.eq.s32.totalorder %s17, 0
    %s20 = sadd.s32 %s19, 1
    %s21 = scalar_select %p18, %s19, %s20
    %p24 = pneg %p18
    %p25 = scmp.eq.s32.totalorder %s9, 1
    %p26 = por %p24, %p25
    %p27 = scmp.ne.s32.totalorder %s19, %s22
    %p28 = scmp.eq.s32.totalorder %s9, 0
    %p29 = por %p27, %p28
    %p30 = scmp.ne.s32.totalorder %s19, %s22
    %p31 = scmp.eq.s32.totalorder %s14, 1
    %p32 = por %p30, %p31
    %p33 = scmp.ne.s32.totalorder %s22, %s23
    %p34 = scmp.eq.s32.totalorder %s14, 0
    %p35 = por %p33, %p34
    %p36 = scmp.ne.s32.totalorder %s22, %s23
    %p37 = scmp.eq.s32.totalorder %s15, 1
    %p38 = por %p36, %p37
    %p40 = scmp.ne.s32.totalorder %s23, %s39
    %p41 = scmp.eq.s32.totalorder %s15, 0
    %p42 = por %p40, %p41
    %s44 = sadd.s32 %s43, 1
    %p47 = scmp.eq.s32.totalorder %s9, 1
    %p48 = scmp.ne.s32.totalorder %s43, %s45
    %p49 = scmp.eq.s32.totalorder %s9, 0
    %p50 = por %p48, %p49
    %p51 = scmp.ne.s32.totalorder %s43, %s45
    %p52 = scmp.eq.s32.totalorder %s14, 1
    %p53 = por %p51, %p52
    %p54 = scmp.ne.s32.totalorder %s45, %s46
    %p55 = scmp.eq.s32.totalorder %s14, 0
    %p56 = por %p54, %p55
    %p57 = scmp.ne.s32.totalorder %s45, %s46
    %p58 = scmp.eq.s32.totalorder %s15, 1
    %p59 = por %p57, %p58
    %p61 = scmp.ne.s32.totalorder %s46, %s60
    %p62 = scmp.eq.s32.totalorder %s15, 0
    %p63 = por %p61, %p62
    %s65 = sadd.s32 %s64, 1
    %p68 = scmp.eq.s32.totalorder %s9, 1
    %p69 = scmp.ne.s32.totalorder %s64, %s66
    %p70 = scmp.eq.s32.totalorder %s9, 0
    %p71 = por %p69, %p70
    %p72 = scmp.ne.s32.totalorder %s64, %s66
    %p73 = scmp.eq.s32.totalorder %s14, 1
    %p74 = por %p72, %p73
    %p75 = scmp.ne.s32.totalorder %s66, %s67
    %p76 = scmp.eq.s32.totalorder %s14, 0
    %p77 = por %p75, %p76
    %p78 = scmp.ne.s32.totalorder %s66, %s67
    %p79 = scmp.eq.s32.totalorder %s15, 1
    %p80 = por %p78, %p79
    %p82 = scmp.ne.s32.totalorder %s67, %s81
    %p83 = scmp.eq.s32.totalorder %s15, 0
    %p84 = por %p82, %p83
    %s85 = ssub.s32 %s9, %s16
    %p86 = scmp.eq.s32.totalorder %s85, 0
    %s88 = sadd.s32 %s87, 1
    %s89 = scalar_select %p86, %s87, %s88
    %p92 = pneg %p86
    %p93 = scmp.eq.s32.totalorder %s9, 1
    %p94 = por %p92, %p93
    %p95 = scmp.ne.s32.totalorder %s87, %s90
    %p96 = scmp.eq.s32.totalorder %s9, 0
    %p97 = por %p95, %p96
    %p98 = scmp.ne.s32.totalorder %s87, %s90
    %p99 = scmp.eq.s32.totalorder %s14, 1
    %p100 = por %p98, %p99
    %p101 = scmp.ne.s32.totalorder %s90, %s91
    %p102 = scmp.eq.s32.totalorder %s14, 0
    %p103 = por %p101, %p102
    %p104 = scmp.ne.s32.totalorder %s90, %s91
    %p105 = scmp.eq.s32.totalorder %s15, 1
    %p106 = por %p104, %p105
    %p108 = scmp.ne.s32.totalorder %s91, %s107
    %p109 = scmp.eq.s32.totalorder %s15, 0
    %p110 = por %p108, %p109
    %p111 = scmp.le.s32.totalorder 1, %s9
    %p112 = scmp.lt.s32.totalorder %s9, 3
    %p113 = pnand %p111, %p112
    %p114 = pneg %p113
    // Predicated region
    $region9: #{tpu_custom_call.1} parent=5 // pred_check
      _
    $region10: #{tpu_custom_call.1} parent=5 // pred_check_branch
      %116 = sbr.rel (%p113) target = $region12
    $region11: #{tpu_custom_call.1} parent=5 // pred_region
      %s117 = ssub.s32 %s9, 1
      // Predicated region
      $region13: #{tpu_custom_call.1} parent=11 // pred_check
        %p118 = pneg %p56
      $region14: #{tpu_custom_call.1} parent=11 // pred_check_branch
        %120 = sbr.rel (%p118) target = $region16
      $region15: #{tpu_custom_call.1} parent=11 // pred_region
        _
      $region16: #{tpu_custom_call.1} parent=11 // pred_fallthru
        _
      // Predicated region
      $region17: #{tpu_custom_call.1} parent=11 // pred_check
        %p121 = pneg %p77
      $region18: #{tpu_custom_call.1} parent=11 // pred_check_branch
        %123 = sbr.rel (%p121) target = $region20
      $region19: #{tpu_custom_call.1} parent=11 // pred_region
        _
      $region20: #{tpu_custom_call.1} parent=11 // pred_fallthru
        _
    $region12: #{tpu_custom_call.1} parent=5 // pred_fallthru
      _
    %p124 = scmp.lt.s32.totalorder %s9, 2
    // Predicated region
    $region21: #{tpu_custom_call.1} parent=5 // pred_check
      %p125 = pneg %p124
    $region22: #{tpu_custom_call.1} parent=5 // pred_check_branch
      %127 = sbr.rel (%p125) target = $region24
    $region23: #{tpu_custom_call.1} parent=5 // pred_region
      // Predicated region
      $region25: #{tpu_custom_call.1} parent=23 // pred_check
        %p128 = pneg %p29
      $region26: #{tpu_custom_call.1} parent=23 // pred_check_branch
        %130 = sbr.rel (%p128) target = $region28
      $region27: #{tpu_custom_call.1} parent=23 // pred_region
        %s131 = smul.u32 16, %s9
        %p132 = scmp.lt.s32.totalorder %s131, 31
        %s133 = scalar_select %p132, %s131, 31
        %s134 = smul.addr %s133, 8
        %s135 = scalar_lea.vmem %s0, %s134
        %s136 = smul.u32 16, %s9
      $region28: #{tpu_custom_call.1} parent=23 // pred_fallthru
        _
    $region24: #{tpu_custom_call.1} parent=5 // pred_fallthru
      _
    %p137 = scmp.le.s32.totalorder 1, %s9
    %p138 = scmp.lt.s32.totalorder %s9, 3
    %p139 = pnand %p137, %p138
    %p140 = pneg %p139
    // Predicated region
    $region29: #{tpu_custom_call.1} parent=5 // pred_check
      _
    $region30: #{tpu_custom_call.1} parent=5 // pred_check_branch
      %142 = sbr.rel (%p139) target = $region32
    $region31: #{tpu_custom_call.1} parent=5 // pred_region
      %s143 = ssub.s32 %s9, 1
      %s144 = smul.u32 16, %s14
      %p145 = scmp.lt.s32.totalorder %s144, 31
      %s146 = scalar_select %p145, %s144, 31
      %s147 = smul.addr %s146, 8
      %s148 = scalar_lea.vmem %s0, %s147
      %p149 = pneg %p35
      %p150 = pneg %p32
      %p151 = pneg %p56
      %p152 = pneg %p53
      %p153 = pneg %p77
      %p154 = pneg %p74
      %p155 = pneg %p103
      %p156 = pneg %p100
      %s157 = smul.u32 16, %s14
      %p158 = scmp.lt.s32.totalorder %s157, 31
      %s159 = scalar_select %p158, %s157, 31
      %s160 = smul.addr %s159, 8
      %s161 = scalar_lea.vmem %s3, %s160
      %s162 = smul.u32 16, %s14
      %p163 = scmp.lt.s32.totalorder %s162, 31
      %s164 = scalar_select %p163, %s162, 31
      %s165 = smul.addr %s164, 8
      %s166 = scalar_lea.vmem %s0, %s165
      %s167 = smul.u32 16, %s14
      %s168 = smul.u32 16, %s14
      %p169 = scmp.lt.s32.totalorder %s168, 31
      %s170 = scalar_select %p169, %s168, 31
      %s171 = smul.addr %s170, 8
      %s172 = scalar_lea.vmem %s3, %s171
      %s173 = smul.u32 16, %s14
      %v175 = vld [vmem:[%s166] sm:$0xff]
      %v176 = vld [vmem:[%s166 + $0x8] sm:$0xff]
      %v177 = vld [vmem:[%s166 + $0x10] sm:$0xff]
      %v178 = vld [vmem:[%s166 + $0x18] sm:$0xff]
      %v179 = vld [vmem:[%s166 + $0x20] sm:$0xff]
      %v180 = vld [vmem:[%s166 + $0x28] sm:$0xff]
      %v181 = vld [vmem:[%s166 + $0x30] sm:$0xff]
      %v182 = vld [vmem:[%s166 + $0x38] sm:$0xff]
      %v183 = vld [vmem:[%s166 + $0x40] sm:$0xff]
      %v184 = vld [vmem:[%s166 + $0x48] sm:$0xff]
      %v185 = vld [vmem:[%s166 + $0x50] sm:$0xff]
      %v186 = vld [vmem:[%s166 + $0x58] sm:$0xff]
      %v187 = vld [vmem:[%s166 + $0x60] sm:$0xff]
      %v188 = vld [vmem:[%s166 + $0x68] sm:$0xff]
      %v189 = vld [vmem:[%s166 + $0x70] sm:$0xff]
      %v190 = vld [vmem:[%s166 + $0x78] sm:$0xff]
      %v191 = vpack.c.bf16 %v176, %v175
      %v192 = vpack.c.bf16 %v178, %v177
      %v193 = vpack.c.bf16 %v180, %v179
      %v194 = vpack.c.bf16 %v182, %v181
      %v195 = vpack.c.bf16 %v184, %v183
      %v196 = vpack.c.bf16 %v186, %v185
      %v197 = vpack.c.bf16 %v188, %v187
      %v198 = vpack.c.bf16 %v190, %v189
      %v199 = vld [vmem:[%s1] sm:$0xf]
      %v200 = vld [vmem:[%s1 + $0x4] sm:$0xf]
      %v201 = vld [vmem:[%s1 + $0x8] sm:$0xf]
      %v202 = vld [vmem:[%s1 + $0xc] sm:$0xf]
      %v203 = vld [vmem:[%s1 + $0x10] sm:$0xf]
      %v204 = vld [vmem:[%s1 + $0x14] sm:$0xf]
      %v205 = vld [vmem:[%s1 + $0x18] sm:$0xf]
      %v206 = vld [vmem:[%s1 + $0x1c] sm:$0xf]
      %v207 = vld [vmem:[%s2] sm:$0x1]
      %v209 = vlaneseq
      %v210 = vshrl.u32 %v209, 7
      %v211 = vsub.s32 0, %v210
      %v212 = vrot.slane %v207, %v211
      %v222 = vunpack.c.l.b16 %v199
      %v223 = vunpack.c.l.b16 %v200
      %v224 = vunpack.c.l.b16 %v201
      %v225 = vunpack.c.l.b16 %v202
      %v226 = vunpack.c.l.b16 %v203
      %v227 = vunpack.c.l.b16 %v204
      %v228 = vunpack.c.l.b16 %v205
      %v229 = vunpack.c.l.b16 %v206
      %v230 = vpack.c.b16 %v223, %v222
      %v231 = vpack.c.b16 %v225, %v224
      %v232 = vpack.c.b16 %v227, %v226
      %v233 = vpack.c.b16 %v229, %v228
      %vm238 = vcmask 523264
      %v240 = vsel %vm238, %v191, 0
      %v243 = vsel %vm238, %v192, 0
      %v246 = vsel %vm238, %v193, 0
      %v249 = vsel %vm238, %v194, 0
      %v252 = vsel %vm238, %v195, 0
      %v255 = vsel %vm238, %v196, 0
      %v258 = vsel %vm238, %v197, 0
      %v261 = vsel %vm238, %v198, 0
      %263 = vmatprep.subr.bf16.mxu0 0
      %264 = vmatpush1.bf16.msra.mxu0 %v230
      %265 = vmatprep.subr.bf16.mxu0 0
      %266 = vmatpush1.bf16.msra.mxu0 %v231
      %267 = vmatprep.subr.bf16.mxu0 0
      %268 = vmatpush1.bf16.msra.mxu0 %v232
      %269 = vmatprep.subr.bf16.mxu0 0
      %270 = vmatpush1.bf16.msra.mxu0 %v233
      %271 = vmatprep.subr.bf16.mxu0 0
      %272 = vmatpush1.bf16.msra.mxu0 0
      %273 = vmatprep.subr.bf16.mxu0 0
      %274 = vmatpush1.bf16.msra.mxu0 0
      %275 = vmatprep.subr.bf16.mxu0 0
      %276 = vmatpush1.bf16.msra.mxu0 0
      %277 = vmatprep.subr.bf16.mxu0 0
      %278 = vmatpush1.bf16.msra.mxu0 0
      %279 = vmatprep.subr.bf16.mxu0 0
      %280 = vmatpush1.bf16.msra.mxu0 0
      %281 = vmatprep.subr.bf16.mxu0 0
      %282 = vmatpush1.bf16.msra.mxu0 0
      %283 = vmatprep.subr.bf16.mxu0 0
      %284 = vmatpush1.bf16.msra.mxu0 0
      %285 = vmatprep.subr.bf16.mxu0 0
      %286 = vmatpush1.bf16.msra.mxu0 0
      %287 = vmatprep.subr.bf16.mxu0 0
      %288 = vmatpush1.bf16.msra.mxu0 0
      %289 = vmatprep.subr.bf16.mxu0 0
      %290 = vmatpush1.bf16.msra.mxu0 0
      %291 = vmatprep.subr.bf16.mxu0 0
      %292 = vmatpush1.bf16.msra.mxu0 0
      %293 = vmatprep.subr.bf16.mxu0 0
      %294 = vmatpush1.bf16.msra.mxu0 0
      %295 = vmatprep.mubr.bf16.mxu0 0
      %296 = vmatmul.mubr.bf16.gmra.mrb[0].mxu0 %v240
      %v297 = vpop.f32.mrb[0].mxu0
      %v298 = vadd.f32 %v212, %v297
      %v299 = vpop.f32.mrb[0].mxu0
      %v300 = vpop.f32.mrb[0].mxu0
      %v301 = vadd.f32 %v212, %v300
      %v302 = vpop.f32.mrb[0].mxu0
      %303 = vmatprep.mubr.bf16.mxu0 0
      %304 = vmatmul.mubr.bf16.gmra.mrb[0].mxu0 %v243
      %v305 = vpop.f32.mrb[0].mxu0
      %v306 = vadd.f32 %v212, %v305
      %v307 = vpop.f32.mrb[0].mxu0
      %v308 = vpop.f32.mrb[0].mxu0
      %v309 = vadd.f32 %v212, %v308
      %v310 = vpop.f32.mrb[0].mxu0
      %311 = vmatprep.mubr.bf16.mxu0 0
      %312 = vmatmul.mubr.bf16.gmra.mrb[0].mxu0 %v246
      %v313 = vpop.f32.mrb[0].mxu0
      %v314 = vadd.f32 %v212, %v313
      %v315 = vpop.f32.mrb[0].mxu0
      %v316 = vpop.f32.mrb[0].mxu0
      %v317 = vadd.f32 %v212, %v316
      %v318 = vpop.f32.mrb[0].mxu0
      %319 = vmatprep.mubr.bf16.mxu0 0
      %320 = vmatmul.mubr.bf16.gmra.mrb[0].mxu0 %v249
      %v321 = vpop.f32.mrb[0].mxu0
      %v322 = vadd.f32 %v212, %v321
      %v323 = vpop.f32.mrb[0].mxu0
      %v324 = vpop.f32.mrb[0].mxu0
      %v325 = vadd.f32 %v212, %v324
      %v326 = vpop.f32.mrb[0].mxu0
      %327 = vmatprep.mubr.bf16.mxu0 0
      %328 = vmatmul.mubr.bf16.gmra.mrb[0].mxu0 %v252
      %v329 = vpop.f32.mrb[0].mxu0
      %v330 = vadd.f32 %v212, %v329
      %v331 = vpop.f32.mrb[0].mxu0
      %v332 = vpop.f32.mrb[0].mxu0
      %v333 = vadd.f32 %v212, %v332
      %v334 = vpop.f32.mrb[0].mxu0
      %335 = vmatprep.mubr.bf16.mxu0 0
      %336 = vmatmul.mubr.bf16.gmra.mrb[0].mxu0 %v255
      %v337 = vpop.f32.mrb[0].mxu0
      %v338 = vadd.f32 %v212, %v337
      %v339 = vpop.f32.mrb[0].mxu0
      %v340 = vpop.f32.mrb[0].mxu0
      %v341 = vadd.f32 %v212, %v340
      %v342 = vpop.f32.mrb[0].mxu0
      %343 = vmatprep.mubr.bf16.mxu0 0
      %344 = vmatmul.mubr.bf16.gmra.mrb[0].mxu0 %v258
      %v345 = vpop.f32.mrb[0].mxu0
      %v346 = vadd.f32 %v212, %v345
      %v347 = vpop.f32.mrb[0].mxu0
      %v348 = vpop.f32.mrb[0].mxu0
      %v349 = vadd.f32 %v212, %v348
      %v350 = vpop.f32.mrb[0].mxu0
      %351 = vmatprep.mubr.bf16.mxu0 0
      %352 = vmatmul.mubr.bf16.gmra.mrb[0].mxu0 %v261
      %v353 = vpop.f32.mrb[0].mxu0
      %v354 = vadd.f32 %v212, %v353
      %v355 = vpop.f32.mrb[0].mxu0
      %v356 = vpop.f32.mrb[0].mxu0
      %v357 = vadd.f32 %v212, %v356
      %v358 = vpop.f32.mrb[0].mxu0
      %359 = vdwg.mxu0
      %v360 = vmax.f32 %v298, 0.0
      %v361 = vmax.f32 %v301, 0.0
      %v362 = vmax.f32 %v306, 0.0
      %v363 = vmax.f32 %v309, 0.0
      %v364 = vmax.f32 %v314, 0.0
      %v365 = vmax.f32 %v317, 0.0
      %v366 = vmax.f32 %v322, 0.0
      %v367 = vmax.f32 %v325, 0.0
      %v368 = vmax.f32 %v330, 0.0
      %v369 = vmax.f32 %v333, 0.0
      %v370 = vmax.f32 %v338, 0.0
      %v371 = vmax.f32 %v341, 0.0
      %v372 = vmax.f32 %v346, 0.0
      %v373 = vmax.f32 %v349, 0.0
      %v374 = vmax.f32 %v354, 0.0
      %v375 = vmax.f32 %v357, 0.0
      %vm376 = vcmask 261120
      %377 = vst.msk [vmem:[%s172] sm:$0xff] %vm376, %v360
      %378 = vst.msk [vmem:[%s172 + $0x8] sm:$0xff] %vm376, %v361
      %379 = vst.msk [vmem:[%s172 + $0x10] sm:$0xff] %vm376, %v362
      %380 = vst.msk [vmem:[%s172 + $0x18] sm:$0xff] %vm376, %v363
      %381 = vst.msk [vmem:[%s172 + $0x20] sm:$0xff] %vm376, %v364
      %382 = vst.msk [vmem:[%s172 + $0x28] sm:$0xff] %vm376, %v365
      %383 = vst.msk [vmem:[%s172 + $0x30] sm:$0xff] %vm376, %v366
      %384 = vst.msk [vmem:[%s172 + $0x38] sm:$0xff] %vm376, %v367
      %385 = vst.msk [vmem:[%s172 + $0x40] sm:$0xff] %vm376, %v368
      %386 = vst.msk [vmem:[%s172 + $0x48] sm:$0xff] %vm376, %v369
      %387 = vst.msk [vmem:[%s172 + $0x50] sm:$0xff] %vm376, %v370
      %388 = vst.msk [vmem:[%s172 + $0x58] sm:$0xff] %vm376, %v371
      %389 = vst.msk [vmem:[%s172 + $0x60] sm:$0xff] %vm376, %v372
      %390 = vst.msk [vmem:[%s172 + $0x68] sm:$0xff] %vm376, %v373
      %391 = vst.msk [vmem:[%s172 + $0x70] sm:$0xff] %vm376, %v374
      %392 = vst.msk [vmem:[%s172 + $0x78] sm:$0xff] %vm376, %v375
      %s393 = smul.u32 16, %s14
      %p394 = scmp.lt.s32.totalorder %s393, 31
      %s395 = scalar_select %p394, %s393, 31
      %s396 = smul.addr %s395, 8
      %s397 = scalar_lea.vmem %s3, %s396
      // Predicated region
      $region33: #{tpu_custom_call.1} parent=31 // pred_check
        %p398 = pneg %p100
      $region34: #{tpu_custom_call.1} parent=31 // pred_check_branch
        %400 = sbr.rel (%p398) target = $region36
      $region35: #{tpu_custom_call.1} parent=31 // pred_region
        %s401 = smul.u32 16, %s14
      $region36: #{tpu_custom_call.1} parent=31 // pred_fallthru
        _
    $region32: #{tpu_custom_call.1} parent=5 // pred_fallthru
      _
    %p402 = scmp.le.s32.totalorder 2, %s9
    // Predicated region
    $region37: #{tpu_custom_call.1} parent=5 // pred_check
      %p403 = pneg %p402
    $region38: #{tpu_custom_call.1} parent=5 // pred_check_branch
      %405 = sbr.rel (%p403) target = $region40
    $region39: #{tpu_custom_call.1} parent=5 // pred_region
      %s406 = ssub.s32 %s9, 2
      // Predicated region
      $region41: #{tpu_custom_call.1} parent=39 // pred_check
        %p407 = pneg %p106
      $region42: #{tpu_custom_call.1} parent=39 // pred_check_branch
        %409 = sbr.rel (%p407) target = $region44
      $region43: #{tpu_custom_call.1} parent=39 // pred_region
        %s410 = smul.u32 16, %s15
        %p411 = scmp.lt.s32.totalorder %s410, 31
        %s412 = scalar_select %p411, %s410, 31
        %s413 = smul.addr %s412, 8
        %s414 = scalar_lea.vmem %s3, %s413
      $region44: #{tpu_custom_call.1} parent=39 // pred_fallthru
        _
    $region40: #{tpu_custom_call.1} parent=5 // pred_fallthru
      _
  $region6: #{tpu_custom_call.1} parent=0 // loop_footer
    %s13 = sadd.s32 1, %s9
  $region7: #{tpu_custom_call.1} parent=0 // loop_footer_branch
    %8 = sbr.rel target = $region3
  $region8: #{tpu_custom_call.1} parent=0 // loop_exit
    _

</llo_original>
